<compile_context>
chip_gen: v7x
topology: tpu7x:2x2x1
jax: 0.10.0
libtpu: 0.0.40
codegen_flags: <defaults>
</compile_context>

<pallas_src>
import jax
import jax.numpy as jnp
from jax.experimental import pallas as pl
from jax.experimental.pallas import tpu as pltpu


def mlp_kernel(b2_ref, x_ref, p_ref, o_ref):
    # b2_ref: (1, 1) f32 in SMEM  -- fc2 bias as a scalar
    # x_ref : (B, 1) f32 in VMEM  -- batch on sublanes
    # p_ref : (3, H) f32 in VMEM  -- row 0 = w1, row 1 = b1, row 2 = w2 (lane-dense)
    # o_ref : (B, 1)              -- batch on sublanes
    x = x_ref[...]                       # (B, 1)
    w1 = p_ref[0:1, :]                   # (1, H)
    b1 = p_ref[1:2, :]                   # (1, H)
    w2 = p_ref[2:3, :]                   # (1, H)
    b2 = b2_ref[0, 0]                    # scalar read from SMEM

    # First linear + ReLU (pure VPU broadcast math): h[b, j] = relu(x[b]*w1[j] + b1[j])
    h = jnp.maximum(x * w1 + b1, 0.0)    # (B, H) -- half a vreg at B=8, H=64

    # Second linear (XLU lane reduction): y[b] = sum_j h[b, j] * w2[j] + b2
    y = jnp.sum(h * w2, axis=1, keepdims=True) + b2   # (B, 1)

    o_ref[...] = y.astype(o_ref.dtype)


def pack_mlp_params(fc1_w, fc1_b, fc2_w, fc2_b):
    """Pack parameters ONCE (model-init time), not per forward call.

    PyTorch Linear convention: fc1_w (H, 1), fc1_b (H,), fc2_w (1, H), fc2_b (1,).
    Returns (params_slab, b2): a lane-dense (3, H) f32 slab and a (1, 1) f32 scalar
    destined for SMEM.
    """
    H = fc1_w.shape[0]
    params = jnp.stack(
        [
            fc1_w.reshape(H).astype(jnp.float32),   # w1
            fc1_b.reshape(H).astype(jnp.float32),   # b1
            fc2_w.reshape(H).astype(jnp.float32),   # w2
        ],
        axis=0,
    )  # (3, H)
    b2 = fc2_b.reshape(1, 1).astype(jnp.float32)
    return params, b2


@jax.jit
def mlp_forward(x, params, b2):
    """x: (B, 1); params: pre-packed (3, H) slab; b2: (1, 1) scalar."""
    B = x.shape[0]
    return pl.pallas_call(
        mlp_kernel,
        out_shape=jax.ShapeDtypeStruct((B, 1), x.dtype),
        in_specs=[
            pl.BlockSpec(memory_space=pltpu.MemorySpace.SMEM),   # b2 (1, 1) scalar
            pl.BlockSpec(memory_space=pltpu.MemorySpace.VMEM),   # x (B, 1)
            pl.BlockSpec(memory_space=pltpu.MemorySpace.VMEM),   # params (3, H)
        ],
        out_specs=pl.BlockSpec(memory_space=pltpu.MemorySpace.VMEM),
    )(b2, x, params)


def mlp_reference(x, fc1_w, fc1_b, fc2_w, fc2_b):
    # PyTorch semantics: y = relu(x @ W1.T + b1) @ W2.T + b2
    h = jnp.maximum(x @ fc1_w.T + fc1_b, 0.0)
    return h @ fc2_w.T + fc2_b


if __name__ == "__main__":
    key = jax.random.PRNGKey(0)
    k_x, k_w1, k_b1, k_w2, k_b2 = jax.random.split(key, 5)

    B, H = 8, 64  # batch=8, hidden=64 per nn.Linear(1, 64)

    x = jax.random.normal(k_x, (B, 1), dtype=jnp.float32)
    # Deterministic synthetic parameters in PyTorch Linear convention.
    fc1_w = jax.random.normal(k_w1, (H, 1), dtype=jnp.float32) * 0.5
    fc1_b = jax.random.normal(k_b1, (H,), dtype=jnp.float32) * 0.1
    fc2_w = jax.random.normal(k_w2, (1, H), dtype=jnp.float32) * 0.5
    fc2_b = jax.random.normal(k_b2, (1,), dtype=jnp.float32) * 0.1

    # Pack once at init; reuse the packed slab across every forward call.
    params, b2 = jax.block_until_ready(pack_mlp_params(fc1_w, fc1_b, fc2_w, fc2_b))

    out = mlp_forward(x, params, b2)
    jax.block_until_ready(out)

    ref = mlp_reference(x, fc1_w, fc1_b, fc2_w, fc2_b)
    assert out.shape == (B, 1)
    assert jnp.allclose(out, ref, atol=1e-5, rtol=1e-5)

    print("KERNEL_OK")
</pallas_src>

<mosaic_0001>
module attributes {stable_mosaic.version = 11 : i64} {
  func.func @mlp_kernel(%arg0: memref<1x1xf32, #tpu.memory_space<smem>>, %arg1: memref<8x1xf32, #tpu.memory_space<vmem>>, %arg2: memref<3x64xf32, #tpu.memory_space<vmem>>, %arg3: memref<8x1xf32, #tpu.memory_space<vmem>>) attributes {dimension_semantics = [], scalar_prefetch = 0 : i64, scratch_operands = 0 : i64, tpu.core_type = #tpu.core_type<tc>} {
    %c0 = arith.constant 0 : index
    %c0_0 = arith.constant 0 : index
    %0 = vector.load %arg1[%c0, %c0_0] : memref<8x1xf32, #tpu.memory_space<vmem>>, vector<8x1xf32>
    %c0_1 = arith.constant 0 : index
    %c0_2 = arith.constant 0 : index
    %1 = vector.load %arg2[%c0_1, %c0_2] : memref<3x64xf32, #tpu.memory_space<vmem>>, vector<1x64xf32>
    %c1 = arith.constant 1 : index
    %c0_3 = arith.constant 0 : index
    %2 = vector.load %arg2[%c1, %c0_3] : memref<3x64xf32, #tpu.memory_space<vmem>>, vector<1x64xf32>
    %c2 = arith.constant 2 : index
    %c0_4 = arith.constant 0 : index
    %3 = vector.load %arg2[%c2, %c0_4] : memref<3x64xf32, #tpu.memory_space<vmem>>, vector<1x64xf32>
    %c0_5 = arith.constant 0 : index
    %c0_6 = arith.constant 0 : index
    %4 = memref.load %arg0[%c0_5, %c0_6] : memref<1x1xf32, #tpu.memory_space<smem>>
    %5 = vector.broadcast %0 : vector<8x1xf32> to vector<8x64xf32>
    %6 = vector.broadcast %1 : vector<1x64xf32> to vector<8x64xf32>
    %7 = arith.mulf %5, %6 : vector<8x64xf32>
    %8 = vector.broadcast %2 : vector<1x64xf32> to vector<8x64xf32>
    %9 = arith.addf %7, %8 : vector<8x64xf32>
    %cst = arith.constant 0.000000e+00 : f32
    %10 = vector.broadcast %cst : f32 to vector<8x64xf32>
    %11 = arith.maximumf %9, %10 : vector<8x64xf32>
    %12 = vector.broadcast %3 : vector<1x64xf32> to vector<8x64xf32>
    %13 = arith.mulf %11, %12 : vector<8x64xf32>
    %cst_7 = arith.constant dense<0.000000e+00> : vector<8xf32>
    %14 = vector.multi_reduction <add>, %13, %cst_7 [1] : vector<8x64xf32> to vector<8xf32>
    %15 = vector.shape_cast %14 : vector<8xf32> to vector<8x1xf32>
    %16 = vector.broadcast %4 : f32 to vector<8x1xf32>
    %17 = arith.addf %15, %16 : vector<8x1xf32>
    %c0_8 = arith.constant 0 : index
    %c0_9 = arith.constant 0 : index
    %18 = vector.load %arg3[%c0_8, %c0_9] : memref<8x1xf32, #tpu.memory_space<vmem>>, vector<8x1xf32>
    tpu.vector_store %arg3[%c0_8, %c0_9], %17 {strides = array<i32>} : memref<8x1xf32, #tpu.memory_space<vmem>>, vector<8x1xf32>,
    return
  }
}

</mosaic_0001>

<llo_original>
// kernel: mlp_forward.1
$region0: #{mlp_forward.1}
  #allocation0 [shape = 'u32[]', space=smem, size = 0x4, offset = 0x4, fixed_abs, tag = 'smem constant byte address 0x4 - core index']
  #allocation1 [shape = 'u32[144,128]{1,0:T(1,128)}', space=vmem, size = 0x12000, scoped, tag = 'internal scratch']
  #allocation2 [shape = 'f32[1,1]{1,0:T(1,128)S(6)}', space=smem, size = 0x200, scoped, tag = 'scoped memory for mlp_forward.1']
  %s0 = inlined_call_operand.<no memory space> [shape: f32[1,1], index: 0, kind: input, shape index: {}]
  %s1 = inlined_call_operand.vmem [shape: f32[8,1], index: 1, kind: input, shape index: {}]
  %s2 = inlined_call_operand.vmem [shape: f32[3,64], index: 2, kind: input, shape index: {}]
  %s3 = inlined_call_operand.vmem [shape: f32[8,1], index: 3, kind: output, shape index: {}]
  %s4 = sld [smem:[#allocation0]]
  $region22: #{mlp_forward.1} parent=0
    _
  %s6 = ssub.s32 1, %s4
  %s7 = scalar_select 0, %s6, %s4
  %8 = sst [smem:[#allocation2]] %s0
  // Predicated region
  $region2: #{mlp_forward.1} parent=0 // pred_check
    _
  $region3: #{mlp_forward.1} parent=0 // pred_check_branch
    %10 = sbr.rel (0) target = $region5
  $region4: #{mlp_forward.1} parent=0 // pred_region
    _
  $region5: #{mlp_forward.1} parent=0 // pred_fallthru
    _
  // Predicated region
  $region6: #{mlp_forward.1} parent=0 // pred_check
    _
  $region7: #{mlp_forward.1} parent=0 // pred_check_branch
    %12 = sbr.rel (0) target = $region9
  $region8: #{mlp_forward.1} parent=0 // pred_region
    _
  $region9: #{mlp_forward.1} parent=0 // pred_fallthru
    _
  // Predicated region
  $region10: #{mlp_forward.1} parent=0 // pred_check
    _
  $region11: #{mlp_forward.1} parent=0 // pred_check_branch
    %14 = sbr.rel (0) target = $region13
  $region12: #{mlp_forward.1} parent=0 // pred_region
    _
  $region13: #{mlp_forward.1} parent=0 // pred_fallthru
    _
  %v15 = vld [vmem:[%s1] sm:$0xff]
  %v16 = vld [vmem:[%s2] sm:$0x1]
  %v17 = vld [vmem:[%s2 + $0x1] sm:$0x1]
  %v18 = vld [vmem:[%s2 + $0x2] sm:$0x1]
  %s19 = sld [smem:[#allocation2]]
  %21 = vset.pattern.permute.xlu0 0
  %22 = vperm.xlu0 %21, %v15
  %v23 = vpop.permute.xlu0 %22
  %v25 = vlaneseq
  %v26 = vshrl.u32 %v25, 7
  %v27 = vsub.s32 0, %v26
  %v28 = vrot.slane %v16, %v27
  %v29 = vmul.f32 %v23, %v28
  %v30 = vlaneseq
  %v31 = vshrl.u32 %v30, 7
  %v32 = vsub.s32 0, %v31
  %v33 = vrot.slane %v17, %v32
  %v34 = vadd.f32 %v29, %v33
  %v35 = vmax.f32 %v34, 0.0
  %v36 = vlaneseq
  %v37 = vshrl.u32 %v36, 7
  %v38 = vsub.s32 0, %v37
  %v39 = vrot.slane %v18, %v38
  %v40 = vmul.f32 %v35, %v39
  %vm41 = vcmask 523264
  %v42 = vsel %vm41, %v40, 0.0
  %43 = vadd.xlane.f32.xlu0 %v42
  %v44 = vpop.xlane.xlu0 %43
  %v45 = vstv %s19
  %v46 = vadd.f32 %v44, %v45
  %vm47 = vcmask 7168
  %48 = vst.msk [vmem:[%s3] sm:$0xff] %vm47, %v46
  // Predicated region
  $region14: #{mlp_forward.1} parent=0 // pred_check
    _
  $region15: #{mlp_forward.1} parent=0 // pred_check_branch
    %50 = sbr.rel (0) target = $region17
  $region16: #{mlp_forward.1} parent=0 // pred_region
    _
  $region17: #{mlp_forward.1} parent=0 // pred_fallthru
    _
  // Predicated region
  $region18: #{mlp_forward.1} parent=0 // pred_check
    _
  $region19: #{mlp_forward.1} parent=0 // pred_check_branch
    %52 = sbr.rel (0) target = $region21
  $region20: #{mlp_forward.1} parent=0 // pred_region
    _
  $region21: #{mlp_forward.1} parent=0 // pred_fallthru
    _

</llo_original>
